<compile_context>
chip_gen: v7x
topology: tpu7x:2x2x1
jax: 0.10.0
libtpu: 0.0.40
codegen_flags: <defaults>
</compile_context>

<pallas_src>
import jax
import jax.numpy as jnp
from jax.experimental import pallas as pl
from jax.experimental.pallas import tpu as pltpu


def _propagation_kernel(x_ref, out_ref, pad_ref):
    # x_ref:   (1, 1, Dt, H, W)   unpadded input block
    # out_ref: (1, 5, Dt, H, W)   five shifted-copy output channels
    # pad_ref: (Dt, H+2, W+2)     VMEM scratch: replicate-padded slab
    H = out_ref.shape[3]
    W = out_ref.shape[4]

    x = x_ref[0, 0]                                      # (Dt, H, W)

    # --- fused ReplicationPad3d((1,1,1,1,0,0)) into the VMEM scratch ---------
    pad_ref[:, 1:H + 1, 1:W + 1] = x                     # center
    pad_ref[:, 0:1, 1:W + 1] = x[:, 0:1, :]              # top row    (h=-1 -> 0)
    pad_ref[:, H + 1:, 1:W + 1] = x[:, H - 1:H, :]       # bottom row (h=H  -> H-1)
    # left / right columns (corners come for free from the rows above)
    pad_ref[:, :, 0:1] = pad_ref[:, :, 1:2]              # w=-1 -> 0
    pad_ref[:, :, W + 1:] = pad_ref[:, :, W:W + 1]       # w=W  -> W-1

    # --- one-hot 3x3 conv == five static shifted windows ---------------------
    out_ref[0, 0] = pad_ref[:, 0:H, 0:W]                 # (kh,kw)=(0,0): (h-1,w-1)
    out_ref[0, 1] = x                                    # (1,1): identity
    out_ref[0, 2] = pad_ref[:, 2:H + 2, 2:W + 2]         # (2,2): (h+1,w+1)
    out_ref[0, 3] = pad_ref[:, 2:H + 2, 0:W]             # (2,0): (h+1,w-1)
    out_ref[0, 4] = pad_ref[:, 0:H, 2:W + 2]             # (0,2): (h-1,w+1)


def _pick_depth_tile(B, D, H, W, itemsize, vmem_budget_bytes=24 * 1024 * 1024):
    """Pick Dt so (double-buffered in+out blocks + padded scratch) fits the budget."""
    # ~ (2 * (1 input + 5 output) + padded scratch) slabs per D-slice, rounded up.
    bytes_per_d = 14 * H * W * itemsize
    dt = max(1, min(D, vmem_budget_bytes // bytes_per_d))
    # Keep >= 4 total grid steps so v7x's 2 TensorCores both get work and the
    # DMA pipeline has something to overlap.
    steps_per_batch = max(1, -(-4 // B))
    dt = max(1, min(dt, -(-D // steps_per_batch)))
    # Uniform blocks: shrink to a divisor of D.
    while D % dt != 0:
        dt -= 1
    return dt


def propagation_prob(prob_volume):
    """prob_volume: (B, 1, D, H, W) -> (B, 5, D, H, W)."""
    B, C, D, H, W = prob_volume.shape
    assert C == 1, "conv3d filter has in_channels=1"
    dtype = prob_volume.dtype
    dt = _pick_depth_tile(B, D, H, W, jnp.dtype(dtype).itemsize)

    return pl.pallas_call(
        _propagation_kernel,
        out_shape=jax.ShapeDtypeStruct((B, 5, D, H, W), dtype),
        grid_spec=pltpu.PrefetchScalarGridSpec(
            num_scalar_prefetch=0,
            grid=(D // dt, B),
            in_specs=[pl.BlockSpec((1, 1, dt, H, W), lambda d, b: (b, 0, d, 0, 0))],
            out_specs=pl.BlockSpec((1, 5, dt, H, W), lambda d, b: (b, 0, d, 0, 0)),
            scratch_shapes=[pltpu.VMEM((dt, H + 2, W + 2), dtype)],
        ),
        compiler_params=pltpu.CompilerParams(
            dimension_semantics=("parallel", "parallel"),
            vmem_limit_bytes=48 * 1024 * 1024,
        ),
    )(prob_volume)


def _reference_conv(prob_volume):
    """Independent reference: replicate-pad + explicit conv3d with the one-hot filter."""
    f = jnp.zeros((5, 1, 1, 3, 3), jnp.float32)
    f = f.at[0, 0, 0, 0, 0].set(1.0)
    f = f.at[1, 0, 0, 1, 1].set(1.0)
    f = f.at[2, 0, 0, 2, 2].set(1.0)
    f = f.at[3, 0, 0, 2, 0].set(1.0)
    f = f.at[4, 0, 0, 0, 2].set(1.0)
    xpad = jnp.pad(prob_volume, ((0, 0), (0, 0), (0, 0), (1, 1), (1, 1)), mode="edge")
    return jax.lax.conv_general_dilated(
        xpad, f, window_strides=(1, 1, 1), padding="VALID",
        dimension_numbers=("NCDHW", "OIDHW", "NCDHW"))


if __name__ == "__main__":
    key = jax.random.PRNGKey(0)
    B, C, D, H, W = 2, 1, 8, 16, 16
    prob_volume = jax.random.uniform(key, (B, C, D, H, W), dtype=jnp.float32)

    out = propagation_prob(prob_volume)
    out = jax.block_until_ready(out)

    ref = _reference_conv(prob_volume)
    assert out.shape == (B, 5, D, H, W), out.shape
    assert jnp.allclose(out, ref, atol=1e-6), float(jnp.abs(out - ref).max())

    print("KERNEL_OK")
</pallas_src>

<mosaic_0001>
module attributes {stable_mosaic.version = 11 : i64} {
  func.func @_propagation_kernel(%arg0: i32, %arg1: i32, %arg2: memref<1x1x4x16x16xf32, #tpu.memory_space<vmem>>, %arg3: memref<1x5x4x16x16xf32, #tpu.memory_space<vmem>>, %arg4: memref<4x18x18xf32, #tpu.memory_space<vmem>>) attributes {dimension_semantics = [#tpu.dimension_semantics<parallel>, #tpu.dimension_semantics<parallel>], iteration_bounds = array<i64: 2, 2>, scalar_prefetch = 0 : i64, scratch_operands = 1 : i64, tpu.core_type = #tpu.core_type<tc>, window_params = [{transform_indices = @transform_0, window_bounds = array<i64: 1, 1, 4, 16, 16>}, {transform_indices = @transform_1, window_bounds = array<i64: 1, 5, 4, 16, 16>}]} {
    %c0 = arith.constant 0 : index
    %c0_0 = arith.constant 0 : index
    %c0_1 = arith.constant 0 : index
    %c0_2 = arith.constant 0 : index
    %c0_3 = arith.constant 0 : index
    %0 = vector.load %arg2[%c0, %c0_0, %c0_1, %c0_2, %c0_3] : memref<1x1x4x16x16xf32, #tpu.memory_space<vmem>>, vector<1x1x4x16x16xf32>
    %1 = vector.shape_cast %0 : vector<1x1x4x16x16xf32> to vector<4x16x16xf32>
    %c0_4 = arith.constant 0 : index
    %c1 = arith.constant 1 : index
    %c1_5 = arith.constant 1 : index
    %2 = vector.load %arg4[%c0_4, %c1, %c1_5] : memref<4x18x18xf32, #tpu.memory_space<vmem>>, vector<4x16x16xf32>
    tpu.vector_store %arg4[%c0_4, %c1, %c1_5], %1 {strides = array<i32>} : memref<4x18x18xf32, #tpu.memory_space<vmem>>, vector<4x16x16xf32>,
    %3 = vector.extract_strided_slice %1 {offsets = [0, 0, 0], sizes = [4, 1, 16], strides = [1, 1, 1]} : vector<4x16x16xf32> to vector<4x1x16xf32>
    %c0_6 = arith.constant 0 : index
    %c0_7 = arith.constant 0 : index
    %c1_8 = arith.constant 1 : index
    %4 = vector.load %arg4[%c0_6, %c0_7, %c1_8] : memref<4x18x18xf32, #tpu.memory_space<vmem>>, vector<4x1x16xf32>
    tpu.vector_store %arg4[%c0_6, %c0_7, %c1_8], %3 {strides = array<i32>} : memref<4x18x18xf32, #tpu.memory_space<vmem>>, vector<4x1x16xf32>,
    %5 = vector.extract_strided_slice %1 {offsets = [0, 15, 0], sizes = [4, 1, 16], strides = [1, 1, 1]} : vector<4x16x16xf32> to vector<4x1x16xf32>
    %c0_9 = arith.constant 0 : index
    %c17 = arith.constant 17 : index
    %c1_10 = arith.constant 1 : index
    %6 = vector.load %arg4[%c0_9, %c17, %c1_10] : memref<4x18x18xf32, #tpu.memory_space<vmem>>, vector<4x1x16xf32>
    tpu.vector_store %arg4[%c0_9, %c17, %c1_10], %5 {strides = array<i32>} : memref<4x18x18xf32, #tpu.memory_space<vmem>>, vector<4x1x16xf32>,
    %c0_11 = arith.constant 0 : index
    %c0_12 = arith.constant 0 : index
    %c1_13 = arith.constant 1 : index
    %7 = vector.load %arg4[%c0_11, %c0_12, %c1_13] : memref<4x18x18xf32, #tpu.memory_space<vmem>>, vector<4x18x1xf32>
    %c0_14 = arith.constant 0 : index
    %c0_15 = arith.constant 0 : index
    %c0_16 = arith.constant 0 : index
    %8 = vector.load %arg4[%c0_14, %c0_15, %c0_16] : memref<4x18x18xf32, #tpu.memory_space<vmem>>, vector<4x18x1xf32>
    tpu.vector_store %arg4[%c0_14, %c0_15, %c0_16], %7 {strides = array<i32>} : memref<4x18x18xf32, #tpu.memory_space<vmem>>, vector<4x18x1xf32>,
    %c0_17 = arith.constant 0 : index
    %c0_18 = arith.constant 0 : index
    %c16 = arith.constant 16 : index
    %9 = vector.load %arg4[%c0_17, %c0_18, %c16] : memref<4x18x18xf32, #tpu.memory_space<vmem>>, vector<4x18x1xf32>
    %c0_19 = arith.constant 0 : index
    %c0_20 = arith.constant 0 : index
    %c17_21 = arith.constant 17 : index
    %10 = vector.load %arg4[%c0_19, %c0_20, %c17_21] : memref<4x18x18xf32, #tpu.memory_space<vmem>>, vector<4x18x1xf32>
    tpu.vector_store %arg4[%c0_19, %c0_20, %c17_21], %9 {strides = array<i32>} : memref<4x18x18xf32, #tpu.memory_space<vmem>>, vector<4x18x1xf32>,
    %c0_22 = arith.constant 0 : index
    %c0_23 = arith.constant 0 : index
    %c0_24 = arith.constant 0 : index
    %11 = vector.load %arg4[%c0_22, %c0_23, %c0_24] : memref<4x18x18xf32, #tpu.memory_space<vmem>>, vector<4x16x16xf32>
    %c0_25 = arith.constant 0 : index
    %c0_26 = arith.constant 0 : index
    %c0_27 = arith.constant 0 : index
    %c0_28 = arith.constant 0 : index
    %c0_29 = arith.constant 0 : index
    %12 = vector.load %arg3[%c0_25, %c0_26, %c0_27, %c0_28, %c0_29] : memref<1x5x4x16x16xf32, #tpu.memory_space<vmem>>, vector<1x1x4x16x16xf32>
    %13 = vector.shape_cast %12 : vector<1x1x4x16x16xf32> to vector<4x16x16xf32>
    %14 = vector.shape_cast %11 : vector<4x16x16xf32> to vector<1x1x4x16x16xf32>
    tpu.vector_store %arg3[%c0_25, %c0_26, %c0_27, %c0_28, %c0_29], %14 {strides = array<i32>} : memref<1x5x4x16x16xf32, #tpu.memory_space<vmem>>, vector<1x1x4x16x16xf32>,
    %c0_30 = arith.constant 0 : index
    %c1_31 = arith.constant 1 : index
    %c0_32 = arith.constant 0 : index
    %c0_33 = arith.constant 0 : index
    %c0_34 = arith.constant 0 : index
    %15 = vector.load %arg3[%c0_30, %c1_31, %c0_32, %c0_33, %c0_34] : memref<1x5x4x16x16xf32, #tpu.memory_space<vmem>>, vector<1x1x4x16x16xf32>
    %16 = vector.shape_cast %15 : vector<1x1x4x16x16xf32> to vector<4x16x16xf32>
    %17 = vector.shape_cast %1 : vector<4x16x16xf32> to vector<1x1x4x16x16xf32>
    tpu.vector_store %arg3[%c0_30, %c1_31, %c0_32, %c0_33, %c0_34], %17 {strides = array<i32>} : memref<1x5x4x16x16xf32, #tpu.memory_space<vmem>>, vector<1x1x4x16x16xf32>,
    %c0_35 = arith.constant 0 : index
    %c2 = arith.constant 2 : index
    %c2_36 = arith.constant 2 : index
    %18 = vector.load %arg4[%c0_35, %c2, %c2_36] : memref<4x18x18xf32, #tpu.memory_space<vmem>>, vector<4x16x16xf32>
    %c0_37 = arith.constant 0 : index
    %c2_38 = arith.constant 2 : index
    %c0_39 = arith.constant 0 : index
    %c0_40 = arith.constant 0 : index
    %c0_41 = arith.constant 0 : index
    %19 = vector.load %arg3[%c0_37, %c2_38, %c0_39, %c0_40, %c0_41] : memref<1x5x4x16x16xf32, #tpu.memory_space<vmem>>, vector<1x1x4x16x16xf32>
    %20 = vector.shape_cast %19 : vector<1x1x4x16x16xf32> to vector<4x16x16xf32>
    %21 = vector.shape_cast %18 : vector<4x16x16xf32> to vector<1x1x4x16x16xf32>
    tpu.vector_store %arg3[%c0_37, %c2_38, %c0_39, %c0_40, %c0_41], %21 {strides = array<i32>} : memref<1x5x4x16x16xf32, #tpu.memory_space<vmem>>, vector<1x1x4x16x16xf32>,
    %c0_42 = arith.constant 0 : index
    %c2_43 = arith.constant 2 : index
    %c0_44 = arith.constant 0 : index
    %22 = vector.load %arg4[%c0_42, %c2_43, %c0_44] : memref<4x18x18xf32, #tpu.memory_space<vmem>>, vector<4x16x16xf32>
    %c0_45 = arith.constant 0 : index
    %c3 = arith.constant 3 : index
    %c0_46 = arith.constant 0 : index
    %c0_47 = arith.constant 0 : index
    %c0_48 = arith.constant 0 : index
    %23 = vector.load %arg3[%c0_45, %c3, %c0_46, %c0_47, %c0_48] : memref<1x5x4x16x16xf32, #tpu.memory_space<vmem>>, vector<1x1x4x16x16xf32>
    %24 = vector.shape_cast %23 : vector<1x1x4x16x16xf32> to vector<4x16x16xf32>
    %25 = vector.shape_cast %22 : vector<4x16x16xf32> to vector<1x1x4x16x16xf32>
    tpu.vector_store %arg3[%c0_45, %c3, %c0_46, %c0_47, %c0_48], %25 {strides = array<i32>} : memref<1x5x4x16x16xf32, #tpu.memory_space<vmem>>, vector<1x1x4x16x16xf32>,
    %c0_49 = arith.constant 0 : index
    %c0_50 = arith.constant 0 : index
    %c2_51 = arith.constant 2 : index
    %26 = vector.load %arg4[%c0_49, %c0_50, %c2_51] : memref<4x18x18xf32, #tpu.memory_space<vmem>>, vector<4x16x16xf32>
    %c0_52 = arith.constant 0 : index
    %c4 = arith.constant 4 : index
    %c0_53 = arith.constant 0 : index
    %c0_54 = arith.constant 0 : index
    %c0_55 = arith.constant 0 : index
    %27 = vector.load %arg3[%c0_52, %c4, %c0_53, %c0_54, %c0_55] : memref<1x5x4x16x16xf32, #tpu.memory_space<vmem>>, vector<1x1x4x16x16xf32>
    %28 = vector.shape_cast %27 : vector<1x1x4x16x16xf32> to vector<4x16x16xf32>
    %29 = vector.shape_cast %26 : vector<4x16x16xf32> to vector<1x1x4x16x16xf32>
    tpu.vector_store %arg3[%c0_52, %c4, %c0_53, %c0_54, %c0_55], %29 {strides = array<i32>} : memref<1x5x4x16x16xf32, #tpu.memory_space<vmem>>, vector<1x1x4x16x16xf32>,
    return
  }
  func.func @transform_0(%arg0: i32, %arg1: i32) -> (i32, i32, i32, i32, i32) {
    %c0_i32 = arith.constant 0 : i32
    %c0_i32_0 = arith.constant 0 : i32
    %c0_i32_1 = arith.constant 0 : i32
    %c0_i32_2 = arith.constant 0 : i32
    return %arg1, %c0_i32, %arg0, %c0_i32_0, %c0_i32_1 : i32, i32, i32, i32, i32
  }
  func.func @transform_1(%arg0: i32, %arg1: i32) -> (i32, i32, i32, i32, i32) {
    %c0_i32 = arith.constant 0 : i32
    %c0_i32_0 = arith.constant 0 : i32
    %c0_i32_1 = arith.constant 0 : i32
    %c0_i32_2 = arith.constant 0 : i32
    return %arg1, %c0_i32, %arg0, %c0_i32_0, %c0_i32_1 : i32, i32, i32, i32, i32
  }
}

</mosaic_0001>

<llo_original>
// kernel: tpu_custom_call.1
$region0: #{tpu_custom_call.1}
  #allocation0 [shape = 'u32[]', space=smem, size = 0x4, offset = 0x4, fixed_abs, tag = 'smem constant byte address 0x4 - core index']
  #allocation1 [shape = 'u32[144,128]{1,0:T(1,128)}', space=vmem, size = 0x12000, scoped, tag = 'internal scratch']
  #allocation2 [shape = 'f32[4,18,18]{2,1,0:T(8,128)}', space=vmem, size = 0xc000, scoped, tag = 'scratch operand']
  #allocation7 [shape = 's32[]', space=sflag, size = 0x4, offset = 0, fixed_abs, tag = 'sflag constant byte address 0x0 - dummy sync flag']
  %s0 = inlined_call_operand.hbm [shape: f32[2,1,8,16,16], index: 0, kind: input, shape index: {}]
  %s1 = inlined_call_operand.hbm [shape: f32[2,5,8,16,16], index: 1, kind: output, shape index: {}]
  %s2 = sld [smem:[#allocation0]]
  $region41: #{tpu_custom_call.1} parent=0
    _
  %s4 = ssub.s32 1, %s2
  %s5 = scalar_select 0, %s4, %s2
  $region1: #{tpu_custom_call.1} parent=0
    #allocation3 [shape = 'u8[65536]{0}', space=vmem, size = 0x10000, scoped, tag = 'input window, operand 0']
    #allocation4 [shape = 's32[2]{0}', space=sflag, size = 0x8, scoped, tag = 'scoped memory for tpu_custom_call.1']
    #allocation5 [shape = 's32[2]{0}', space=sflag, size = 0x8, scoped, tag = 'scoped memory for tpu_custom_call.1']
    #allocation6 [shape = 'u8[327680]{0}', space=vmem, size = 0x50000, scoped, tag = 'output window, operand 0']
    %6 = vsyncpa [#allocation4], 0
    %s7 = scalar_lea.sflag [#allocation4], 1
    %8 = vsyncpa %s7, 0
    %9 = vsyncpa [#allocation5], 0
    %s10 = scalar_lea.sflag [#allocation5], 1
    %11 = vsyncpa %s10, 0
    loop: start=0, step=1, limit=6
    $region2: #{tpu_custom_call.1} parent=1 // loop_pre_header
      _
    $region3: #{tpu_custom_call.1} parent=1 // loop_header
      %s13 = sphi 0, %s17
      %p14 = scmp.ge.s32.totalorder %s13, 6
      %s20 = sphi 0, %s32
      %s21 = sphi 0, %s28
      %s22 = sphi 0, %s20
      %s23 = sphi 0, %s21
      %s24 = sphi 0, %s22
      %s25 = sphi 0, %s23
      %s37 = sphi 0, %s39
      %s40 = sphi 0, %s37
      %s41 = sphi 0, %s40
      %s57 = sphi 0, %s41
      %s65 = sphi 0, %s67
      %s68 = sphi 0, %s65
      %s69 = sphi 0, %s68
      %s85 = sphi 0, %s69
    $region4: #{tpu_custom_call.1} parent=1 // loop_header_branch
      %16 = sbr.rel (%p14) target = $region8
    $region5: #{tpu_custom_call.1} parent=1 // loop_body
      %s18 = ssub.s32 %s13, 1
      %s19 = ssub.s32 %s13, 2
      %s26 = sadd.s32 1, %s21
      %p27 = scmp.ge.s32.totalorder %s26, 2
      %s28 = scalar_select %p27, 0, %s26
      %s29 = sadd.s32 1, %s20
      %s30 = scalar_select %p27, %s29, %s20
      %p31 = scmp.ge.s32.totalorder %s30, 2
      %s32 = scalar_select %p31, 0, %s30
      %s33 = ssub.s32 %s21, %s28
      %s34 = ssub.s32 %s20, %s32
      %s35 = sor.u32 %s33, %s34
      %p36 = scmp.eq.s32.totalorder %s35, 0
      %s38 = sadd.s32 %s37, 1
      %s39 = scalar_select %p36, %s37, %s38
      %p42 = pneg %p36
      %p43 = scmp.eq.s32.totalorder %s13, 3
      %p44 = por %p42, %p43
      %p45 = scmp.ne.s32.totalorder %s37, %s40
      %p46 = scmp.eq.s32.totalorder %s13, 0
      %p47 = por %p45, %p46
      %p48 = scmp.ne.s32.totalorder %s37, %s40
      %p49 = scmp.eq.s32.totalorder %s18, 3
      %p50 = por %p48, %p49
      %p51 = scmp.ne.s32.totalorder %s40, %s41
      %p52 = scmp.eq.s32.totalorder %s18, 0
      %p53 = por %p51, %p52
      %p54 = scmp.ne.s32.totalorder %s40, %s41
      %p55 = scmp.eq.s32.totalorder %s19, 3
      %p56 = por %p54, %p55
      %p58 = scmp.ne.s32.totalorder %s41, %s57
      %p59 = scmp.eq.s32.totalorder %s19, 0
      %p60 = por %p58, %p59
      %s61 = ssub.s32 %s21, %s28
      %s62 = ssub.s32 %s20, %s32
      %s63 = sor.u32 %s61, %s62
      %p64 = scmp.eq.s32.totalorder %s63, 0
      %s66 = sadd.s32 %s65, 1
      %s67 = scalar_select %p64, %s65, %s66
      %p70 = pneg %p64
      %p71 = scmp.eq.s32.totalorder %s13, 3
      %p72 = por %p70, %p71
      %p73 = scmp.ne.s32.totalorder %s65, %s68
      %p74 = scmp.eq.s32.totalorder %s13, 0
      %p75 = por %p73, %p74
      %p76 = scmp.ne.s32.totalorder %s65, %s68
      %p77 = scmp.eq.s32.totalorder %s18, 3
      %p78 = por %p76, %p77
      %p79 = scmp.ne.s32.totalorder %s68, %s69
      %p80 = scmp.eq.s32.totalorder %s18, 0
      %p81 = por %p79, %p80
      %p82 = scmp.ne.s32.totalorder %s68, %s69
      %p83 = scmp.eq.s32.totalorder %s19, 3
      %p84 = por %p82, %p83
      %p86 = scmp.ne.s32.totalorder %s69, %s85
      %p87 = scmp.eq.s32.totalorder %s19, 0
      %p88 = por %p86, %p87
      %p89 = scmp.le.s32.totalorder 1, %s13
      %p90 = scmp.lt.s32.totalorder %s13, 5
      %p91 = pnand %p89, %p90
      %p92 = pneg %p91
      // Predicated region
      $region9: #{tpu_custom_call.1} parent=5 // pred_check
        _
      $region10: #{tpu_custom_call.1} parent=5 // pred_check_branch
        %94 = sbr.rel (%p91) target = $region12
      $region11: #{tpu_custom_call.1} parent=5 // pred_region
        %s95 = ssub.s32 %s13, 1
      $region12: #{tpu_custom_call.1} parent=5 // pred_fallthru
        _
      %p96 = scmp.lt.s32.totalorder %s13, 4
      // Predicated region
      $region13: #{tpu_custom_call.1} parent=5 // pred_check
        %p97 = pneg %p96
      $region14: #{tpu_custom_call.1} parent=5 // pred_check_branch
        %99 = sbr.rel (%p97) target = $region16
      $region15: #{tpu_custom_call.1} parent=5 // pred_region
        // Predicated region
        $region17: #{tpu_custom_call.1} parent=15 // pred_check
          %p100 = pneg %p47
        $region18: #{tpu_custom_call.1} parent=15 // pred_check_branch
          %102 = sbr.rel (%p100) target = $region20
        $region19: #{tpu_custom_call.1} parent=15 // pred_region
          %s103 = sand.u32 %s37, 1
          %s104 = scalar_lea.sflag [#allocation4], %s103
          %s105 = sand.u32 %s37, 1
          %s106 = smul.addr %s105, 64
          %s107 = scalar_lea.vmem [#allocation3], %s106
          %s108 = smul.u32 4, %s20
          %s110 = ssub.s32 1024, 1024
          %111 = vsyncadd %s104, %s110
          %s112 = smul.addr %s108, 2
          %s113 = smul.addr %s21, 16
          %s114 = sadd.s32 %s112, %s113
          %s115 = smul.addr %s114, 128
          %s116 = scalar_lea.hbm %s0, %s115
          %s117 = sshll.u32 %s107, 4
          %s118 = int_to_ptr.vmem [resolvable:$true] %s117
          %123 = dma.hbm_to_vmem [thread:$0]  %s116, 1024, %s118, %s104, 128, 128, 8
        $region20: #{tpu_custom_call.1} parent=15 // pred_fallthru
          _
      $region16: #{tpu_custom_call.1} parent=5 // pred_fallthru
        _
      %p124 = scmp.le.s32.totalorder 1, %s13
      %p125 = scmp.lt.s32.totalorder %s13, 5
      %p126 = pnand %p124, %p125
      %p127 = pneg %p126
      // Predicated region
      $region21: #{tpu_custom_call.1} parent=5 // pred_check
        _
      $region22: #{tpu_custom_call.1} parent=5 // pred_check_branch
        %129 = sbr.rel (%p126) target = $region24
      $region23: #{tpu_custom_call.1} parent=5 // pred_region
        %s130 = ssub.s32 %s13, 1
        %s131 = sand.u32 %s40, 1
        %s132 = scalar_lea.sflag [#allocation4], %s131
        %s133 = sand.u32 %s40, 1
        %s134 = smul.addr %s133, 64
        %s135 = scalar_lea.vmem [#allocation3], %s134
        // Predicated region
        $region25: #{tpu_custom_call.1} parent=23 // pred_check
          %p136 = pneg %p53
        $region26: #{tpu_custom_call.1} parent=23 // pred_check_branch
          %138 = sbr.rel (%p136) target = $region28
        $region27: #{tpu_custom_call.1} parent=23 // pred_region
          %139 = dma.done %s132, 1024
        $region28: #{tpu_custom_call.1} parent=23 // pred_fallthru
          _
        %s140 = sand.u32 %s40, 1
        %s141 = scalar_lea.sflag [#allocation4], %s140
        %s142 = sand.u32 %s40, 1
        %s143 = smul.addr %s142, 64
        %s144 = scalar_lea.vmem [#allocation3], %s143
        %p145 = pneg %p53
        %p146 = pneg %p50
        %p147 = pneg %p81
        %p148 = pneg %p78
        %s149 = sand.u32 %s68, 1
        %s150 = scalar_lea.sflag [#allocation5], %s149
        %s151 = sand.u32 %s68, 1
        %s152 = smul.addr %s151, 320
        %s153 = scalar_lea.vmem [#allocation6], %s152
        %s154 = smul.u32 4, %s22
        %s155 = smul.u32 4, %s22
        %v156 = vld [vmem:[%s135] sm:$0xff]
        %v157 = vld [vmem:[%s135 + $0x8] sm:$0xff]
        %v158 = vld [vmem:[%s135 + $0x10] sm:$0xff]
        %v159 = vld [vmem:[%s135 + $0x18] sm:$0xff]
        %v160 = vld [vmem:[%s135 + $0x20] sm:$0xff]
        %v161 = vld [vmem:[%s135 + $0x28] sm:$0xff]
        %v162 = vld [vmem:[%s135 + $0x30] sm:$0xff]
        %v163 = vld [vmem:[%s135 + $0x38] sm:$0xff]
        %172 = vrot.lane.b32.xlu0 %v156, 1
        %v173 = vpop.permute.xlu0 %172
        %174 = vrot.lane.b32.xlu0 %v157, 1
        %v175 = vpop.permute.xlu0 %174
        %176 = vrot.lane.b32.xlu0 %v158, 1
        %v177 = vpop.permute.xlu0 %176
        %178 = vrot.lane.b32.xlu0 %v159, 1
        %v179 = vpop.permute.xlu0 %178
        %180 = vrot.lane.b32.xlu0 %v160, 1
        %v181 = vpop.permute.xlu0 %180
        %182 = vrot.lane.b32.xlu0 %v161, 1
        %v183 = vpop.permute.xlu0 %182
        %184 = vrot.lane.b32.xlu0 %v162, 1
        %v185 = vpop.permute.xlu0 %184
        %186 = vrot.lane.b32.xlu0 %v163, 1
        %v187 = vpop.permute.xlu0 %186
        %vm196 = vcmask 138248
        %197 = vst.msk [vmem:[#allocation2 + $0x1] sm:$0xff] %vm196, %v173
        %198 = vst.msk [vmem:[#allocation2 + $0x9] sm:$0xff] %vm196, %v175
        %199 = vst.msk [vmem:[#allocation2 + $0x19] sm:$0xff] %vm196, %v177
        %200 = vst.msk [vmem:[#allocation2 + $0x21] sm:$0xff] %vm196, %v179
        %201 = vst.msk [vmem:[#allocation2 + $0x31] sm:$0xff] %vm196, %v181
        %202 = vst.msk [vmem:[#allocation2 + $0x39] sm:$0xff] %vm196, %v183
        %203 = vst.msk [vmem:[#allocation2 + $0x49] sm:$0xff] %vm196, %v185
        %204 = vst.msk [vmem:[#allocation2 + $0x51] sm:$0xff] %vm196, %v187
        %vm205 = vcmask 131080
        %206 = vst.msk [vmem:[#allocation2] sm:$0x1] %vm205, %v173
        %207 = vst.msk [vmem:[#allocation2 + $0x18] sm:$0x1] %vm205, %v177
        %208 = vst.msk [vmem:[#allocation2 + $0x30] sm:$0x1] %vm205, %v181
        %209 = vst.msk [vmem:[#allocation2 + $0x48] sm:$0x1] %vm205, %v185
        %vm210 = vcmask 138255
        %211 = vst.msk [vmem:[#allocation2 + $0xa] sm:$0x80] %vm210, %v175
        %212 = vst.msk [vmem:[#allocation2 + $0x22] sm:$0x80] %vm210, %v179
        %213 = vst.msk [vmem:[#allocation2 + $0x3a] sm:$0x80] %vm210, %v183
        %214 = vst.msk [vmem:[#allocation2 + $0x52] sm:$0x80] %vm210, %v187
        %v215 = vld [vmem:[#allocation2] sm:$0xff]
        %v216 = vld [vmem:[#allocation2 + $0x8] sm:$0xff]
        %v217 = vld [vmem:[#allocation2 + $0x10] sm:$0x3]
        %v218 = vld [vmem:[#allocation2 + $0x18] sm:$0xff]
        %v219 = vld [vmem:[#allocation2 + $0x20] sm:$0xff]
        %v220 = vld [vmem:[#allocation2 + $0x28] sm:$0x3]
        %v221 = vld [vmem:[#allocation2 + $0x30] sm:$0xff]
        %v222 = vld [vmem:[#allocation2 + $0x38] sm:$0xff]
        %v223 = vld [vmem:[#allocation2 + $0x40] sm:$0x3]
        %v224 = vld [vmem:[#allocation2 + $0x48] sm:$0xff]
        %v225 = vld [vmem:[#allocation2 + $0x50] sm:$0xff]
        %v226 = vld [vmem:[#allocation2 + $0x58] sm:$0x3]
        %239 = vrot.lane.b32.xlu0 %v215, 127
        %v240 = vpop.permute.xlu0 %239
        %241 = vrot.lane.b32.xlu0 %v216, 127
        %v242 = vpop.permute.xlu0 %241
        %243 = vrot.lane.b32.xlu0 %v217, 127
        %v244 = vpop.permute.xlu0 %243
        %245 = vrot.lane.b32.xlu0 %v218, 127
        %v246 = vpop.permute.xlu0 %245
        %247 = vrot.lane.b32.xlu0 %v219, 127
        %v248 = vpop.permute.xlu0 %247
        %249 = vrot.lane.b32.xlu0 %v220, 127
        %v250 = vpop.permute.xlu0 %249
        %251 = vrot.lane.b32.xlu0 %v221, 127
        %v252 = vpop.permute.xlu0 %251
        %253 = vrot.lane.b32.xlu0 %v222, 127
        %v254 = vpop.permute.xlu0 %253
        %255 = vrot.lane.b32.xlu0 %v223, 127
        %v256 = vpop.permute.xlu0 %255
        %257 = vrot.lane.b32.xlu0 %v224, 127
        %v258 = vpop.permute.xlu0 %257
        %259 = vrot.lane.b32.xlu0 %v225, 127
        %v260 = vpop.permute.xlu0 %259
        %261 = vrot.lane.b32.xlu0 %v226, 127
        %v262 = vpop.permute.xlu0 %261
        %vm275 = vcmask 7168
        %276 = vst.msk [vmem:[#allocation2] sm:$0xff] %vm275, %v240
        %277 = vst.msk [vmem:[#allocation2 + $0x8] sm:$0xff] %vm275, %v242
        %vm278 = vcmask 1024
        %279 = vst.msk [vmem:[#allocation2 + $0x10] sm:$0x3] %vm278, %v244
        %280 = vst.msk [vmem:[#allocation2 + $0x18] sm:$0xff] %vm275, %v246
        %281 = vst.msk [vmem:[#allocation2 + $0x20] sm:$0xff] %vm275, %v248
        %282 = vst.msk [vmem:[#allocation2 + $0x28] sm:$0x3] %vm278, %v250
        %283 = vst.msk [vmem:[#allocation2 + $0x30] sm:$0xff] %vm275, %v252
        %284 = vst.msk [vmem:[#allocation2 + $0x38] sm:$0xff] %vm275, %v254
        %285 = vst.msk [vmem:[#allocation2 + $0x40] sm:$0x3] %vm278, %v256
        %286 = vst.msk [vmem:[#allocation2 + $0x48] sm:$0xff] %vm275, %v258
        %287 = vst.msk [vmem:[#allocation2 + $0x50] sm:$0xff] %vm275, %v260
        %288 = vst.msk [vmem:[#allocation2 + $0x58] sm:$0x3] %vm278, %v262
        %v289 = vld [vmem:[#allocation2] sm:$0xff]
        %v290 = vld [vmem:[#allocation2 + $0x8] sm:$0xff]
        %v291 = vld [vmem:[#allocation2 + $0x10] sm:$0x3]
        %v292 = vld [vmem:[#allocation2 + $0x18] sm:$0xff]
        %v293 = vld [vmem:[#allocation2 + $0x20] sm:$0xff]
        %v294 = vld [vmem:[#allocation2 + $0x28] sm:$0x3]
        %v295 = vld [vmem:[#allocation2 + $0x30] sm:$0xff]
        %v296 = vld [vmem:[#allocation2 + $0x38] sm:$0xff]
        %v297 = vld [vmem:[#allocation2 + $0x40] sm:$0x3]
        %v298 = vld [vmem:[#allocation2 + $0x48] sm:$0xff]
        %v299 = vld [vmem:[#allocation2 + $0x50] sm:$0xff]
        %v300 = vld [vmem:[#allocation2 + $0x58] sm:$0x3]
        %313 = vrot.lane.b32.xlu0 %v289, 1
        %v314 = vpop.permute.xlu0 %313
        %315 = vrot.lane.b32.xlu0 %v290, 1
        %v316 = vpop.permute.xlu0 %315
        %317 = vrot.lane.b32.xlu0 %v291, 1
        %v318 = vpop.permute.xlu0 %317
        %319 = vrot.lane.b32.xlu0 %v292, 1
        %v320 = vpop.permute.xlu0 %319
        %321 = vrot.lane.b32.xlu0 %v293, 1
        %v322 = vpop.permute.xlu0 %321
        %323 = vrot.lane.b32.xlu0 %v294, 1
        %v324 = vpop.permute.xlu0 %323
        %325 = vrot.lane.b32.xlu0 %v295, 1
        %v326 = vpop.permute.xlu0 %325
        %327 = vrot.lane.b32.xlu0 %v296, 1
        %v328 = vpop.permute.xlu0 %327
        %329 = vrot.lane.b32.xlu0 %v297, 1
        %v330 = vpop.permute.xlu0 %329
        %331 = vrot.lane.b32.xlu0 %v298, 1
        %v332 = vpop.permute.xlu0 %331
        %333 = vrot.lane.b32.xlu0 %v299, 1
        %v334 = vpop.permute.xlu0 %333
        %335 = vrot.lane.b32.xlu0 %v300, 1
        %v336 = vpop.permute.xlu0 %335
        %vm349 = vcmask 146568
        %350 = vst.msk [vmem:[#allocation2] sm:$0xff] %vm349, %v314
        %351 = vst.msk [vmem:[#allocation2 + $0x8] sm:$0xff] %vm349, %v316
        %vm352 = vcmask 140424
        %353 = vst.msk [vmem:[#allocation2 + $0x10] sm:$0x3] %vm352, %v318
        %354 = vst.msk [vmem:[#allocation2 + $0x18] sm:$0xff] %vm349, %v320
        %355 = vst.msk [vmem:[#allocation2 + $0x20] sm:$0xff] %vm349, %v322
        %356 = vst.msk [vmem:[#allocation2 + $0x28] sm:$0x3] %vm352, %v324
        %357 = vst.msk [vmem:[#allocation2 + $0x30] sm:$0xff] %vm349, %v326
        %358 = vst.msk [vmem:[#allocation2 + $0x38] sm:$0xff] %vm349, %v328
        %359 = vst.msk [vmem:[#allocation2 + $0x40] sm:$0x3] %vm352, %v330
        %360 = vst.msk [vmem:[#allocation2 + $0x48] sm:$0xff] %vm349, %v332
        %361 = vst.msk [vmem:[#allocation2 + $0x50] sm:$0xff] %vm349, %v334
        %362 = vst.msk [vmem:[#allocation2 + $0x58] sm:$0x3] %vm352, %v336
        %v363 = vld [vmem:[#allocation2] sm:$0xff]
        %v364 = vld [vmem:[#allocation2 + $0x8] sm:$0xff]
        %v365 = vld [vmem:[#allocation2 + $0x18] sm:$0xff]
        %v366 = vld [vmem:[#allocation2 + $0x20] sm:$0xff]
        %v367 = vld [vmem:[#allocation2 + $0x30] sm:$0xff]
        %v368 = vld [vmem:[#allocation2 + $0x38] sm:$0xff]
        %v369 = vld [vmem:[#allocation2 + $0x48] sm:$0xff]
        %v370 = vld [vmem:[#allocation2 + $0x50] sm:$0xff]
        %vm371 = vcmask 130048
        %372 = vst.msk [vmem:[%s153] sm:$0xff] %vm371, %v363
        %373 = vst.msk [vmem:[%s153 + $0x8] sm:$0xff] %vm371, %v364
        %374 = vst.msk [vmem:[%s153 + $0x10] sm:$0xff] %vm371, %v365
        %375 = vst.msk [vmem:[%s153 + $0x18] sm:$0xff] %vm371, %v366
        %376 = vst.msk [vmem:[%s153 + $0x20] sm:$0xff] %vm371, %v367
        %377 = vst.msk [vmem:[%s153 + $0x28] sm:$0xff] %vm371, %v368
        %378 = vst.msk [vmem:[%s153 + $0x30] sm:$0xff] %vm371, %v369
        %379 = vst.msk [vmem:[%s153 + $0x38] sm:$0xff] %vm371, %v370
        %s380 = scalar_lea.vmem %s153, 64 [#allocation6]
        %381 = vst.msk [vmem:[%s380] sm:$0xff] %vm371, %v156
        %382 = vst.msk [vmem:[%s380 + $0x8] sm:$0xff] %vm371, %v157
        %383 = vst.msk [vmem:[%s380 + $0x10] sm:$0xff] %vm371, %v158
        %384 = vst.msk [vmem:[%s380 + $0x18] sm:$0xff] %vm371, %v159
        %385 = vst.msk [vmem:[%s380 + $0x20] sm:$0xff] %vm371, %v160
        %386 = vst.msk [vmem:[%s380 + $0x28] sm:$0xff] %vm371, %v161
        %387 = vst.msk [vmem:[%s380 + $0x30] sm:$0xff] %vm371, %v162
        %388 = vst.msk [vmem:[%s380 + $0x38] sm:$0xff] %vm371, %v163
        %v389 = vld [vmem:[#allocation2 + $0x2] sm:$0xff]
        %v390 = vld [vmem:[#allocation2 + $0xa] sm:$0xff]
        %v391 = vld [vmem:[#allocation2 + $0x1a] sm:$0xff]
        %v392 = vld [vmem:[#allocation2 + $0x22] sm:$0xff]
        %v393 = vld [vmem:[#allocation2 + $0x32] sm:$0xff]
        %v394 = vld [vmem:[#allocation2 + $0x3a] sm:$0xff]
        %v395 = vld [vmem:[#allocation2 + $0x4a] sm:$0xff]
        %v396 = vld [vmem:[#allocation2 + $0x52] sm:$0xff]
        %405 = vrot.lane.b32.xlu0 %v389, 126
        %v406 = vpop.permute.xlu0 %405
        %407 = vrot.lane.b32.xlu0 %v390, 126
        %v408 = vpop.permute.xlu0 %407
        %409 = vrot.lane.b32.xlu0 %v391, 126
        %v410 = vpop.permute.xlu0 %409
        %411 = vrot.lane.b32.xlu0 %v392, 126
        %v412 = vpop.permute.xlu0 %411
        %413 = vrot.lane.b32.xlu0 %v393, 126
        %v414 = vpop.permute.xlu0 %413
        %415 = vrot.lane.b32.xlu0 %v394, 126
        %v416 = vpop.permute.xlu0 %415
        %417 = vrot.lane.b32.xlu0 %v395, 126
        %v418 = vpop.permute.xlu0 %417
        %419 = vrot.lane.b32.xlu0 %v396, 126
        %v420 = vpop.permute.xlu0 %419
        %s429 = scalar_lea.vmem %s153, 128 [#allocation6]
        %430 = vst.msk [vmem:[%s429] sm:$0xff] %vm371, %v406
        %431 = vst.msk [vmem:[%s429 + $0x8] sm:$0xff] %vm371, %v408
        %432 = vst.msk [vmem:[%s429 + $0x10] sm:$0xff] %vm371, %v410
        %433 = vst.msk [vmem:[%s429 + $0x18] sm:$0xff] %vm371, %v412
        %434 = vst.msk [vmem:[%s429 + $0x20] sm:$0xff] %vm371, %v414
        %435 = vst.msk [vmem:[%s429 + $0x28] sm:$0xff] %vm371, %v416
        %436 = vst.msk [vmem:[%s429 + $0x30] sm:$0xff] %vm371, %v418
        %437 = vst.msk [vmem:[%s429 + $0x38] sm:$0xff] %vm371, %v420
        %v438 = vld [vmem:[#allocation2 + $0x2] sm:$0xff]
        %v439 = vld [vmem:[#allocation2 + $0xa] sm:$0xff]
        %v440 = vld [vmem:[#allocation2 + $0x1a] sm:$0xff]
        %v441 = vld [vmem:[#allocation2 + $0x22] sm:$0xff]
        %v442 = vld [vmem:[#allocation2 + $0x32] sm:$0xff]
        %v443 = vld [vmem:[#allocation2 + $0x3a] sm:$0xff]
        %v444 = vld [vmem:[#allocation2 + $0x4a] sm:$0xff]
        %v445 = vld [vmem:[#allocation2 + $0x52] sm:$0xff]
        %s446 = scalar_lea.vmem %s153, 192 [#allocation6]
        %447 = vst.msk [vmem:[%s446] sm:$0xff] %vm371, %v438
        %448 = vst.msk [vmem:[%s446 + $0x8] sm:$0xff] %vm371, %v439
        %449 = vst.msk [vmem:[%s446 + $0x10] sm:$0xff] %vm371, %v440
        %450 = vst.msk [vmem:[%s446 + $0x18] sm:$0xff] %vm371, %v441
        %451 = vst.msk [vmem:[%s446 + $0x20] sm:$0xff] %vm371, %v442
        %452 = vst.msk [vmem:[%s446 + $0x28] sm:$0xff] %vm371, %v443
        %453 = vst.msk [vmem:[%s446 + $0x30] sm:$0xff] %vm371, %v444
        %454 = vst.msk [vmem:[%s446 + $0x38] sm:$0xff] %vm371, %v445
        %v455 = vld [vmem:[#allocation2] sm:$0xff]
        %v456 = vld [vmem:[#allocation2 + $0x8] sm:$0xff]
        %v457 = vld [vmem:[#allocation2 + $0x18] sm:$0xff]
        %v458 = vld [vmem:[#allocation2 + $0x20] sm:$0xff]
        %v459 = vld [vmem:[#allocation2 + $0x30] sm:$0xff]
        %v460 = vld [vmem:[#allocation2 + $0x38] sm:$0xff]
        %v461 = vld [vmem:[#allocation2 + $0x48] sm:$0xff]
        %v462 = vld [vmem:[#allocation2 + $0x50] sm:$0xff]
        %471 = vrot.lane.b32.xlu0 %v455, 126
        %v472 = vpop.permute.xlu0 %471
        %473 = vrot.lane.b32.xlu0 %v456, 126
        %v474 = vpop.permute.xlu0 %473
        %475 = vrot.lane.b32.xlu0 %v457, 126
        %v476 = vpop.permute.xlu0 %475
        %477 = vrot.lane.b32.xlu0 %v458, 126
        %v478 = vpop.permute.xlu0 %477
        %479 = vrot.lane.b32.xlu0 %v459, 126
        %v480 = vpop.permute.xlu0 %479
        %481 = vrot.lane.b32.xlu0 %v460, 126
        %v482 = vpop.permute.xlu0 %481
        %483 = vrot.lane.b32.xlu0 %v461, 126
        %v484 = vpop.permute.xlu0 %483
        %485 = vrot.lane.b32.xlu0 %v462, 126
        %v486 = vpop.permute.xlu0 %485
        %s495 = scalar_lea.vmem %s153, 256 [#allocation6]
        %496 = vst.msk [vmem:[%s495] sm:$0xff] %vm371, %v472
        %497 = vst.msk [vmem:[%s495 + $0x8] sm:$0xff] %vm371, %v474
        %498 = vst.msk [vmem:[%s495 + $0x10] sm:$0xff] %vm371, %v476
        %499 = vst.msk [vmem:[%s495 + $0x18] sm:$0xff] %vm371, %v478
        %500 = vst.msk [vmem:[%s495 + $0x20] sm:$0xff] %vm371, %v480
        %501 = vst.msk [vmem:[%s495 + $0x28] sm:$0xff] %vm371, %v482
        %502 = vst.msk [vmem:[%s495 + $0x30] sm:$0xff] %vm371, %v484
        %503 = vst.msk [vmem:[%s495 + $0x38] sm:$0xff] %vm371, %v486
        %s504 = sand.u32 %s68, 1
        %s505 = scalar_lea.sflag [#allocation5], %s504
        %s506 = sand.u32 %s68, 1
        %s507 = smul.addr %s506, 320
        %s508 = scalar_lea.vmem [#allocation6], %s507
        // Predicated region
        $region29: #{tpu_custom_call.1} parent=23 // pred_check
          %p509 = pneg %p78
        $region30: #{tpu_custom_call.1} parent=23 // pred_check_branch
          %511 = sbr.rel (%p509) target = $region32
        $region31: #{tpu_custom_call.1} parent=23 // pred_region
          #allocation8 [shape = 'u32[6]{0}', space=smem, size = 0x18, scoped, tag = 'DMA stride descriptor']
          %s512 = smul.u32 4, %s22
          %s514 = ssub.s32 5120, 5120
          %515 = vsyncadd %s505, %s514
          %s516 = smul.addr %s512, 2
          %s517 = smul.addr %s23, 80
          %s518 = sadd.s32 %s516, %s517
          %s519 = smul.addr %s518, 128
          %s520 = scalar_lea.hbm %s1, %s519
          %s522 = sshll.u32 1, 14
          %s523 = sxor.u32 4294967295, %s522
          %s526 = sshll.u32 7, 18
          %s527 = sxor.u32 4294967295, %s526
          %s528 = sand.u32 0, %s527
          %s530 = sor.u32 %s528, 0
          %s532 = sshll.u32 3, 24
          %s533 = sxor.u32 4294967295, %s532
          %s534 = sand.u32 %s530, %s533
          %s536 = sor.u32 %s534, 0
          %s537 = sshll.u32 %s508, 4
          %s538 = int_to_ptr.vmem [resolvable:$true] %s537
          %544 = sst [smem:[#allocation8]] 1024
          %s545 = scalar_lea.smem [#allocation8], 1
          %546 = sst [smem:[%s545]] 2048
          %s547 = scalar_lea.smem [#allocation8], 2
          %548 = sst [smem:[%s547]] 8
          %s549 = scalar_lea.smem [#allocation8], 3
          %550 = sst [smem:[%s549]] 128
          %s551 = scalar_lea.smem [#allocation8], 4
          %552 = sst [smem:[%s551]] 128
          %s553 = scalar_lea.smem [#allocation8], 5
          %554 = sst [smem:[%s553]] 8
          %556 = dma.general %s538, 5120, %s520, %s505, [#allocation7], [#allocation8], %s536, 0
        $region32: #{tpu_custom_call.1} parent=23 // pred_fallthru
          _
      $region24: #{tpu_custom_call.1} parent=5 // pred_fallthru
        _
      %p557 = scmp.le.s32.totalorder 2, %s13
      // Predicated region
      $region33: #{tpu_custom_call.1} parent=5 // pred_check
        %p558 = pneg %p557
      $region34: #{tpu_custom_call.1} parent=5 // pred_check_branch
        %560 = sbr.rel (%p558) target = $region36
      $region35: #{tpu_custom_call.1} parent=5 // pred_region
        %s561 = ssub.s32 %s13, 2
        // Predicated region
        $region37: #{tpu_custom_call.1} parent=35 // pred_check
          %p562 = pneg %p84
        $region38: #{tpu_custom_call.1} parent=35 // pred_check_branch
          %564 = sbr.rel (%p562) target = $region40
        $region39: #{tpu_custom_call.1} parent=35 // pred_region
          %s565 = sand.u32 %s69, 1
          %s566 = scalar_lea.sflag [#allocation5], %s565
          %s567 = sand.u32 %s69, 1
          %s568 = smul.addr %s567, 320
          %s569 = scalar_lea.vmem [#allocation6], %s568
          %570 = dma.done %s566, 5120
        $region40: #{tpu_custom_call.1} parent=35 // pred_fallthru
          _
      $region36: #{tpu_custom_call.1} parent=5 // pred_fallthru
        _
    $region6: #{tpu_custom_call.1} parent=1 // loop_footer
      %s17 = sadd.s32 1, %s13
    $region7: #{tpu_custom_call.1} parent=1 // loop_footer_branch
      %12 = sbr.rel target = $region3
    $region8: #{tpu_custom_call.1} parent=1 // loop_exit
      _
    %571 = vsyncpa [#allocation4], 1
    %s572 = scalar_lea.sflag [#allocation4], 1
    %573 = vsyncpa %s572, 1
    %574 = vsyncpa [#allocation5], 1
    %s575 = scalar_lea.sflag [#allocation5], 1
    %576 = vsyncpa %s575, 1

</llo_original>
